<compile_context>
chip_gen: v7x
topology: tpu7x:2x2x1
jax: 0.10.0
libtpu: 0.0.40
codegen_flags: <defaults>
</compile_context>

<pallas_src>
from functools import partial

import jax
import jax.numpy as jnp
import numpy as np
from jax import lax
from jax.experimental import pallas as pl
from jax.experimental.pallas import tpu as pltpu


def _pick_tile(n, target, multiple=16):
    """Largest multiple-of-`multiple` tile <= target that divides n, else full n.

    `multiple=16` keeps bf16 sublane packing happy.  Falls back to the full
    dimension (fine for small n; for large prime-ish n consider padding N).
    """
    if n <= target:
        return n
    t = (target // multiple) * multiple
    while t >= multiple:
        if n % t == 0:
            return t
        t -= multiple
    return n


def _vmem_budget_bytes():
    """Generation-aware scoped-VMEM limit (leave ~30% headroom, cap at 64 MiB)."""
    try:
        cap = int(pltpu.get_tpu_info().vmem_capacity_bytes)
    except Exception:
        cap = 64 * 1024 * 1024  # unknown part: assume the small (v7x-like) budget
    return int(min(64 * 1024 * 1024, cap * 0.7))


# --------------------------- kernel 1: QKV projection ------------------------

def qkv_proj_kernel(x_ref, wq_ref, wk_ref, wv_ref, q_ref, k_ref, v_ref):
    # Feed the MXU bf16: cast the activation tile once; weights are already bf16.
    x = x_ref[0].astype(wq_ref.dtype)                             # (tn, D) bf16
    q_ref[0] = jnp.dot(x, wq_ref[...],
                       preferred_element_type=jnp.float32).astype(q_ref.dtype)
    k_ref[0] = jnp.dot(x, wk_ref[...],
                       preferred_element_type=jnp.float32).astype(k_ref.dtype)
    v_ref[0] = jnp.dot(x, wv_ref[...],
                       preferred_element_type=jnp.float32).astype(v_ref.dtype)


# ------------------ kernel 2: flash attention + output projection ------------

def flash_attn_kernel(q_ref, k_ref, v_ref, wout_ref, bout_ref, o_ref,
                      m_s, l_s, acc_s, *, heads, dim_head):
    kv = pl.program_id(2)
    nkv = pl.num_programs(2)

    @pl.when(kv == 0)
    def _init():
        m_s[...] = jnp.full_like(m_s, -jnp.inf)
        l_s[...] = jnp.zeros_like(l_s)
        acc_s[...] = jnp.zeros_like(acc_s)

    # Unrolled per-head online-softmax update.  The softmax scale is already
    # folded into W_q, so the score tile needs no extra VPU multiply.
    for h in range(heads):
        lo, hi = h * dim_head, (h + 1) * dim_head
        q_h = q_ref[0, :, lo:hi]                                  # (tq, Dh) bf16
        k_h = k_ref[0, :, lo:hi]                                  # (tk, Dh) bf16
        v_h = v_ref[0, :, lo:hi]                                  # (tk, Dh) bf16

        # Contract last axes directly -> no explicit transpose; bf16 MXU, f32 acc.
        s = lax.dot_general(q_h, k_h, (((1,), (1,)), ((), ())),
                            preferred_element_type=jnp.float32)   # (tq, tk) f32

        m_prev = m_s[:, h:h + 1]
        m_new = jnp.maximum(m_prev, jnp.max(s, axis=-1, keepdims=True))
        alpha = jnp.exp(m_prev - m_new)
        p = jnp.exp(s - m_new)
        l_s[:, h:h + 1] = alpha * l_s[:, h:h + 1] + jnp.sum(p, axis=-1, keepdims=True)
        acc_s[:, lo:hi] = alpha * acc_s[:, lo:hi] + jnp.dot(
            p.astype(v_h.dtype), v_h, preferred_element_type=jnp.float32)
        m_s[:, h:h + 1] = m_new

    @pl.when(kv == nkv - 1)
    def _finalize():
        # Normalise each head, then one full-width projection (K = heads*dim_head
        # -> full MXU contraction depth) written straight to the f32 output block.
        inv_l = pl.reciprocal(l_s[...], approx=True)              # (tq, H)
        for h in range(heads):
            lo, hi = h * dim_head, (h + 1) * dim_head
            acc_s[:, lo:hi] = acc_s[:, lo:hi] * inv_l[:, h:h + 1]
        out_all = acc_s[...].astype(wout_ref.dtype)               # (tq, inner) bf16
        proj = jnp.dot(out_all, wout_ref[...],
                       preferred_element_type=jnp.float32)        # (tq, D) f32
        o_ref[0] = (proj + bout_ref[...].astype(jnp.float32)).astype(o_ref.dtype)


# --------------------------------- wrapper -----------------------------------

def self_attention(x, w_qkv, w_out, b_out, *, heads, dim_head,
                   q_tile_target=512, kv_tile_target=512, n_tile_target=512,
                   compute_dtype=jnp.bfloat16):
    B, N, D = x.shape
    inner = heads * dim_head
    scale = float(dim_head) ** -0.5
    out_dtype = x.dtype
    vmem_limit = _vmem_budget_bytes()

    # One-time weight prep: split, fold softmax scale into W_q, cast to bf16.
    wq, wk, wv = jnp.split(w_qkv, 3, axis=1)                      # each (D, inner)
    wq = (wq * scale).astype(compute_dtype)
    wk = wk.astype(compute_dtype)
    wv = wv.astype(compute_dtype)
    w_out_c = w_out.astype(compute_dtype)                         # (inner, D)

    # ---- kernel 1: lane-dense QKV projection ----
    tn = _pick_tile(N, n_tile_target)
    nt = N // tn
    cost1 = pl.CostEstimate(
        flops=2 * B * N * D * 3 * inner,
        transcendentals=0,
        bytes_accessed=int(B * N * D * 4 + 3 * D * inner * 2 + 3 * B * N * inner * 2))
    q, k, v = pl.pallas_call(
        qkv_proj_kernel,
        out_shape=[jax.ShapeDtypeStruct((B, N, inner), compute_dtype)] * 3,
        grid_spec=pltpu.PrefetchScalarGridSpec(
            num_scalar_prefetch=0,
            grid=(B, nt),
            in_specs=[
                pl.BlockSpec((1, tn, D), lambda b, n: (b, n, 0)),
                pl.BlockSpec((D, inner), lambda b, n: (0, 0)),
                pl.BlockSpec((D, inner), lambda b, n: (0, 0)),
                pl.BlockSpec((D, inner), lambda b, n: (0, 0)),
            ],
            out_specs=[
                pl.BlockSpec((1, tn, inner), lambda b, n: (b, n, 0)),
                pl.BlockSpec((1, tn, inner), lambda b, n: (b, n, 0)),
                pl.BlockSpec((1, tn, inner), lambda b, n: (b, n, 0)),
            ],
        ),
        compiler_params=pltpu.CompilerParams(
            dimension_semantics=("parallel", "parallel"),
            vmem_limit_bytes=vmem_limit),
        cost_estimate=cost1,
    )(x, wq, wk, wv)

    # ---- kernel 2: flash attention + deferred full-width output projection ----
    tq = _pick_tile(N, q_tile_target)
    tk = _pick_tile(N, kv_tile_target)
    nq = N // tq
    nk = N // tk
    cost2 = pl.CostEstimate(
        flops=B * (4 * N * N * inner + 2 * N * inner * D),
        transcendentals=B * heads * N * N,
        bytes_accessed=int(B * N * inner * 2 + 2 * nq * B * N * inner * 2
                           + inner * D * 2 + D * 4 + B * N * D * 4))

    # TODO(synk): on v5e (lowest HBM BW) consider pipeline_mode=pl.Buffered(3)
    # for the k/v BlockSpecs; left at the default depth here for portability.
    kernel = partial(flash_attn_kernel, heads=heads, dim_head=dim_head)
    out = pl.pallas_call(
        kernel,
        out_shape=jax.ShapeDtypeStruct((B, N, D), out_dtype),
        grid_spec=pltpu.PrefetchScalarGridSpec(
            num_scalar_prefetch=0,
            grid=(B, nq, nk),
            in_specs=[
                pl.BlockSpec((1, tq, inner), lambda b, i, j: (b, i, 0)),
                pl.BlockSpec((1, tk, inner), lambda b, i, j: (b, j, 0)),
                pl.BlockSpec((1, tk, inner), lambda b, i, j: (b, j, 0)),
                pl.BlockSpec((inner, D), lambda b, i, j: (0, 0)),
                pl.BlockSpec((1, D), lambda b, i, j: (0, 0)),
            ],
            out_specs=pl.BlockSpec((1, tq, D), lambda b, i, j: (b, i, 0)),
            scratch_shapes=[
                pltpu.VMEM((tq, heads), jnp.float32),   # running max, per head
                pltpu.VMEM((tq, heads), jnp.float32),   # running denom, per head
                pltpu.VMEM((tq, inner), jnp.float32),   # PV accumulator, all heads
            ],
        ),
        compiler_params=pltpu.CompilerParams(
            dimension_semantics=("parallel", "parallel", "arbitrary"),
            vmem_limit_bytes=vmem_limit),
        cost_estimate=cost2,
    )(q, k, v, w_out_c, b_out)
    return out


# --------------------------------- reference ---------------------------------

def reference(x, w_qkv, w_out, b_out, *, heads, dim_head):
    B, N, D = x.shape
    inner = heads * dim_head
    scale = float(dim_head) ** -0.5
    qkv = x @ w_qkv                                               # (B, N, 3*inner)
    q, k, v = jnp.split(qkv, 3, axis=-1)

    def to_heads(t):
        return t.reshape(B, N, heads, dim_head).transpose(0, 2, 1, 3)

    q, k, v = map(to_heads, (q, k, v))                            # (B, H, N, Dh)
    dots = jnp.einsum('bhid,bhjd->bhij', q, k) * scale
    attn = jax.nn.softmax(dots, axis=-1)
    out = jnp.einsum('bhij,bhjd->bhid', attn, v)
    out = out.transpose(0, 2, 1, 3).reshape(B, N, inner)
    return out @ w_out + b_out


if __name__ == "__main__":
    # Small, module-consistent shapes.
    B, N, D = 2, 8, 32
    heads, dim_head = 4, 16
    inner = heads * dim_head

    key = jax.random.PRNGKey(0)
    kx, kqkv, kwo, kbo = jax.random.split(key, 4)

    x = jax.random.normal(kx, (B, N, D), dtype=jnp.float32)
    # Deterministic synthetic parameters (scaled like Linear inits).
    w_qkv = jax.random.normal(kqkv, (D, 3 * inner), dtype=jnp.float32) * (1.0 / np.sqrt(D))
    w_out = jax.random.normal(kwo, (inner, D), dtype=jnp.float32) * (1.0 / np.sqrt(inner))
    b_out = jax.random.normal(kbo, (1, D), dtype=jnp.float32) * 0.01

    y = self_attention(x, w_qkv, w_out, b_out, heads=heads, dim_head=dim_head)
    y = jax.block_until_ready(y)

    y_ref = reference(x, w_qkv, w_out, b_out, heads=heads, dim_head=dim_head)
    # bf16 MXU feeding + approx reciprocal -> compare to the f32 reference at
    # bf16-level tolerance.
    np.testing.assert_allclose(np.asarray(y, dtype=np.float32), np.asarray(y_ref),
                               rtol=5e-2, atol=5e-2)
    print("KERNEL_OK")
</pallas_src>

<mosaic_0001>
module attributes {stable_mosaic.version = 11 : i64} {
  func.func @qkv_proj_kernel(%arg0: i32, %arg1: i32, %arg2: memref<1x8x32xf32, #tpu.memory_space<vmem>>, %arg3: memref<32x64xbf16, #tpu.memory_space<vmem>>, %arg4: memref<32x64xbf16, #tpu.memory_space<vmem>>, %arg5: memref<32x64xbf16, #tpu.memory_space<vmem>>, %arg6: memref<1x8x64xbf16, #tpu.memory_space<vmem>>, %arg7: memref<1x8x64xbf16, #tpu.memory_space<vmem>>, %arg8: memref<1x8x64xbf16, #tpu.memory_space<vmem>>) attributes {dimension_semantics = [#tpu.dimension_semantics<parallel>, #tpu.dimension_semantics<parallel>], iteration_bounds = array<i64: 2, 1>, scalar_prefetch = 0 : i64, scratch_operands = 0 : i64, tpu.core_type = #tpu.core_type<tc>, window_params = [{transform_indices = @transform_0, window_bounds = array<i64: 1, 8, 32>}, {pipeline_mode = #tpu.pipeline_mode<synchronous>, transform_indices = @transform_1, window_bounds = array<i64: 32, 64>}, {pipeline_mode = #tpu.pipeline_mode<synchronous>, transform_indices = @transform_2, window_bounds = array<i64: 32, 64>}, {pipeline_mode = #tpu.pipeline_mode<synchronous>, transform_indices = @transform_3, window_bounds = array<i64: 32, 64>}, {transform_indices = @transform_4, window_bounds = array<i64: 1, 8, 64>}, {transform_indices = @transform_5, window_bounds = array<i64: 1, 8, 64>}, {transform_indices = @transform_6, window_bounds = array<i64: 1, 8, 64>}]} {
    %c0 = arith.constant 0 : index
    %c0_0 = arith.constant 0 : index
    %c0_1 = arith.constant 0 : index
    %0 = vector.load %arg2[%c0, %c0_0, %c0_1] : memref<1x8x32xf32, #tpu.memory_space<vmem>>, vector<1x8x32xf32>
    %1 = vector.shape_cast %0 : vector<1x8x32xf32> to vector<8x32xf32>
    %2 = arith.truncf %1 : vector<8x32xf32> to vector<8x32xbf16>
    %c0_2 = arith.constant 0 : index
    %c0_3 = arith.constant 0 : index
    %3 = vector.load %arg3[%c0_2, %c0_3] : memref<32x64xbf16, #tpu.memory_space<vmem>>, vector<32x64xbf16>
    %cst = arith.constant dense<0.000000e+00> : vector<8x64xf32>
    %4 = tpu.matmul %2, %3, %cst {dimension_numbers = #tpu.dot_dimension_numbers<[1], [0], [0], [1], [0, 0, 1, 1], [], []>} : vector<8x32xbf16>, vector<32x64xbf16>, vector<8x64xf32> -> vector<8x64xf32>
    %5 = arith.truncf %4 : vector<8x64xf32> to vector<8x64xbf16>
    %c0_4 = arith.constant 0 : index
    %c0_5 = arith.constant 0 : index
    %c0_6 = arith.constant 0 : index
    %6 = vector.load %arg6[%c0_4, %c0_5, %c0_6] : memref<1x8x64xbf16, #tpu.memory_space<vmem>>, vector<1x8x64xbf16>
    %7 = vector.shape_cast %6 : vector<1x8x64xbf16> to vector<8x64xbf16>
    %8 = vector.shape_cast %5 : vector<8x64xbf16> to vector<1x8x64xbf16>
    tpu.vector_store %arg6[%c0_4, %c0_5, %c0_6], %8 {strides = array<i32>} : memref<1x8x64xbf16, #tpu.memory_space<vmem>>, vector<1x8x64xbf16>,
    %c0_7 = arith.constant 0 : index
    %c0_8 = arith.constant 0 : index
    %9 = vector.load %arg4[%c0_7, %c0_8] : memref<32x64xbf16, #tpu.memory_space<vmem>>, vector<32x64xbf16>
    %cst_9 = arith.constant dense<0.000000e+00> : vector<8x64xf32>
    %10 = tpu.matmul %2, %9, %cst_9 {dimension_numbers = #tpu.dot_dimension_numbers<[1], [0], [0], [1], [0, 0, 1, 1], [], []>} : vector<8x32xbf16>, vector<32x64xbf16>, vector<8x64xf32> -> vector<8x64xf32>
    %11 = arith.truncf %10 : vector<8x64xf32> to vector<8x64xbf16>
    %c0_10 = arith.constant 0 : index
    %c0_11 = arith.constant 0 : index
    %c0_12 = arith.constant 0 : index
    %12 = vector.load %arg7[%c0_10, %c0_11, %c0_12] : memref<1x8x64xbf16, #tpu.memory_space<vmem>>, vector<1x8x64xbf16>
    %13 = vector.shape_cast %12 : vector<1x8x64xbf16> to vector<8x64xbf16>
    %14 = vector.shape_cast %11 : vector<8x64xbf16> to vector<1x8x64xbf16>
    tpu.vector_store %arg7[%c0_10, %c0_11, %c0_12], %14 {strides = array<i32>} : memref<1x8x64xbf16, #tpu.memory_space<vmem>>, vector<1x8x64xbf16>,
    %c0_13 = arith.constant 0 : index
    %c0_14 = arith.constant 0 : index
    %15 = vector.load %arg5[%c0_13, %c0_14] : memref<32x64xbf16, #tpu.memory_space<vmem>>, vector<32x64xbf16>
    %cst_15 = arith.constant dense<0.000000e+00> : vector<8x64xf32>
    %16 = tpu.matmul %2, %15, %cst_15 {dimension_numbers = #tpu.dot_dimension_numbers<[1], [0], [0], [1], [0, 0, 1, 1], [], []>} : vector<8x32xbf16>, vector<32x64xbf16>, vector<8x64xf32> -> vector<8x64xf32>
    %17 = arith.truncf %16 : vector<8x64xf32> to vector<8x64xbf16>
    %c0_16 = arith.constant 0 : index
    %c0_17 = arith.constant 0 : index
    %c0_18 = arith.constant 0 : index
    %18 = vector.load %arg8[%c0_16, %c0_17, %c0_18] : memref<1x8x64xbf16, #tpu.memory_space<vmem>>, vector<1x8x64xbf16>
    %19 = vector.shape_cast %18 : vector<1x8x64xbf16> to vector<8x64xbf16>
    %20 = vector.shape_cast %17 : vector<8x64xbf16> to vector<1x8x64xbf16>
    tpu.vector_store %arg8[%c0_16, %c0_17, %c0_18], %20 {strides = array<i32>} : memref<1x8x64xbf16, #tpu.memory_space<vmem>>, vector<1x8x64xbf16>,
    return
  }
  func.func @transform_0(%arg0: i32, %arg1: i32) -> (i32, i32, i32) {
    %c0_i32 = arith.constant 0 : i32
    %c0_i32_0 = arith.constant 0 : i32
    return %arg0, %arg1, %c0_i32 : i32, i32, i32
  }
  func.func @transform_1(%arg0: i32, %arg1: i32) -> (i32, i32) {
    %c0_i32 = arith.constant 0 : i32
    %c0_i32_0 = arith.constant 0 : i32
    %c0_i32_1 = arith.constant 0 : i32
    return %c0_i32, %c0_i32_0 : i32, i32
  }
  func.func @transform_2(%arg0: i32, %arg1: i32) -> (i32, i32) {
    %c0_i32 = arith.constant 0 : i32
    %c0_i32_0 = arith.constant 0 : i32
    %c0_i32_1 = arith.constant 0 : i32
    return %c0_i32, %c0_i32_0 : i32, i32
  }
  func.func @transform_3(%arg0: i32, %arg1: i32) -> (i32, i32) {
    %c0_i32 = arith.constant 0 : i32
    %c0_i32_0 = arith.constant 0 : i32
    %c0_i32_1 = arith.constant 0 : i32
    return %c0_i32, %c0_i32_0 : i32, i32
  }
  func.func @transform_4(%arg0: i32, %arg1: i32) -> (i32, i32, i32) {
    %c0_i32 = arith.constant 0 : i32
    %c0_i32_0 = arith.constant 0 : i32
    return %arg0, %arg1, %c0_i32 : i32, i32, i32
  }
  func.func @transform_5(%arg0: i32, %arg1: i32) -> (i32, i32, i32) {
    %c0_i32 = arith.constant 0 : i32
    %c0_i32_0 = arith.constant 0 : i32
    return %arg0, %arg1, %c0_i32 : i32, i32, i32
  }
  func.func @transform_6(%arg0: i32, %arg1: i32) -> (i32, i32, i32) {
    %c0_i32 = arith.constant 0 : i32
    %c0_i32_0 = arith.constant 0 : i32
    return %arg0, %arg1, %c0_i32 : i32, i32, i32
  }
}

</mosaic_0001>

<llo_original>
// kernel: tpu_custom_call.1
$region0: #{tpu_custom_call.1}
  #allocation0 [shape = 'u32[]', space=smem, size = 0x4, offset = 0x4, fixed_abs, tag = 'smem constant byte address 0x4 - core index']
  #allocation1 [shape = 'u32[144,128]{1,0:T(1,128)}', space=vmem, size = 0x12000, scoped, tag = 'internal scratch']
  %s0 = inlined_call_operand.hbm [shape: f32[2,8,32], index: 0, kind: input, shape index: {}]
  %s1 = inlined_call_operand.hbm [shape: bf16[32,64], index: 1, kind: input, shape index: {}]
  %s2 = inlined_call_operand.hbm [shape: bf16[32,64], index: 2, kind: input, shape index: {}]
  %s3 = inlined_call_operand.hbm [shape: bf16[32,64], index: 3, kind: input, shape index: {}]
  %s4 = inlined_call_operand.hbm [shape: bf16[2,8,64], index: 4, kind: output, shape index: {0}]
  %s5 = inlined_call_operand.hbm [shape: bf16[2,8,64], index: 5, kind: output, shape index: {1}]
  %s6 = inlined_call_operand.hbm [shape: bf16[2,8,64], index: 6, kind: output, shape index: {2}]
  %7 = xla_tuple %s4, %s5, %s6
  %s8 = sld [smem:[#allocation0]]
  $region81: #{tpu_custom_call.1} parent=0
    _
  %s10 = ssub.s32 1, %s8
  %s11 = scalar_select 0, %s10, %s8
  $region1: #{tpu_custom_call.1} parent=0
    #allocation2 [shape = 'u8[8192]{0}', space=vmem, size = 0x2000, scoped, tag = 'input window, operand 0']
    #allocation3 [shape = 's32[2]{0}', space=sflag, size = 0x8, scoped, tag = 'scoped memory for tpu_custom_call.1']
    #allocation4 [shape = 's32[2]{0}', space=sflag, size = 0x8, scoped, tag = 'scoped memory for tpu_custom_call.1']
    #allocation5 [shape = 'u8[8192]{0}', space=vmem, size = 0x2000, scoped, tag = 'input window, operand 1, single buffered']
    #allocation6 [shape = 's32[1]{0}', space=sflag, size = 0x4, scoped, tag = 'scoped memory for tpu_custom_call.1']
    #allocation7 [shape = 'u8[8192]{0}', space=vmem, size = 0x2000, scoped, tag = 'input window, operand 2, single buffered']
    #allocation8 [shape = 'u8[8192]{0}', space=vmem, size = 0x2000, scoped, tag = 'input window, operand 3, single buffered']
    #allocation9 [shape = 's32[1]{0}', space=sflag, size = 0x4, scoped, tag = 'scoped memory for tpu_custom_call.1']
    #allocation10 [shape = 'u8[4096]{0}', space=vmem, size = 0x1000, scoped, tag = 'output window, operand 0']
    #allocation11 [shape = 'u8[4096]{0}', space=vmem, size = 0x1000, scoped, tag = 'output window, operand 1']
    #allocation12 [shape = 's32[2]{0}', space=sflag, size = 0x8, scoped, tag = 'scoped memory for tpu_custom_call.1']
    #allocation13 [shape = 'u8[4096]{0}', space=vmem, size = 0x1000, scoped, tag = 'output window, operand 2']
    %12 = vsyncpa [#allocation3], 0
    %s13 = scalar_lea.sflag [#allocation3], 1
    %14 = vsyncpa %s13, 0
    %15 = vsyncpa [#allocation6], 0
    %16 = vsyncpa [#allocation9], 0
    %17 = vsyncpa [#allocation4], 0
    %s18 = scalar_lea.sflag [#allocation4], 1
    %19 = vsyncpa %s18, 0
    %20 = vsyncpa [#allocation12], 0
    %s21 = scalar_lea.sflag [#allocation12], 1
    %22 = vsyncpa %s21, 0
    loop: start=0, step=1, limit=4
    $region2: #{tpu_custom_call.1} parent=1 // loop_pre_header
      _
    $region3: #{tpu_custom_call.1} parent=1 // loop_header
      %s24 = sphi 0, %s28
      %p25 = scmp.ge.s32.totalorder %s24, 4
      %s31 = sphi 0, %s43
      %s32 = sphi 0, %s39
      %s33 = sphi 0, %s31
      %s34 = sphi 0, %s32
      %s35 = sphi 0, %s33
      %s36 = sphi 0, %s34
      %s48 = sphi 0, %s50
      %s51 = sphi 0, %s48
      %s52 = sphi 0, %s51
      %s68 = sphi 0, %s52
      %s72 = sphi 0, %s72
      %s74 = sphi 0, %s72
      %s75 = sphi 0, %s74
      %s89 = sphi 0, %s75
      %s93 = sphi 0, %s93
      %s95 = sphi 0, %s93
      %s96 = sphi 0, %s95
      %s110 = sphi 0, %s96
      %s114 = sphi 0, %s114
      %s116 = sphi 0, %s114
      %s117 = sphi 0, %s116
      %s131 = sphi 0, %s117
      %s139 = sphi 0, %s141
      %s142 = sphi 0, %s139
      %s143 = sphi 0, %s142
      %s159 = sphi 0, %s143
      %s167 = sphi 0, %s169
      %s170 = sphi 0, %s167
      %s171 = sphi 0, %s170
      %s187 = sphi 0, %s171
      %s195 = sphi 0, %s197
      %s198 = sphi 0, %s195
      %s199 = sphi 0, %s198
      %s215 = sphi 0, %s199
    $region4: #{tpu_custom_call.1} parent=1 // loop_header_branch
      %27 = sbr.rel (%p25) target = $region8
    $region5: #{tpu_custom_call.1} parent=1 // loop_body
      %s29 = ssub.s32 %s24, 1
      %s30 = ssub.s32 %s24, 2
      %s37 = sadd.s32 1, %s32
      %p38 = scmp.ge.s32.totalorder %s37, 1
      %s39 = scalar_select %p38, 0, %s37
      %s40 = sadd.s32 1, %s31
      %s41 = scalar_select %p38, %s40, %s31
      %p42 = scmp.ge.s32.totalorder %s41, 2
      %s43 = scalar_select %p42, 0, %s41
      %s44 = ssub.s32 %s31, %s43
      %s45 = ssub.s32 %s32, %s39
      %s46 = sor.u32 %s44, %s45
      %p47 = scmp.eq.s32.totalorder %s46, 0
      %s49 = sadd.s32 %s48, 1
      %s50 = scalar_select %p47, %s48, %s49
      %p53 = pneg %p47
      %p54 = scmp.eq.s32.totalorder %s24, 1
      %p55 = por %p53, %p54
      %p56 = scmp.ne.s32.totalorder %s48, %s51
      %p57 = scmp.eq.s32.totalorder %s24, 0
      %p58 = por %p56, %p57
      %p59 = scmp.ne.s32.totalorder %s48, %s51
      %p60 = scmp.eq.s32.totalorder %s29, 1
      %p61 = por %p59, %p60
      %p62 = scmp.ne.s32.totalorder %s51, %s52
      %p63 = scmp.eq.s32.totalorder %s29, 0
      %p64 = por %p62, %p63
      %p65 = scmp.ne.s32.totalorder %s51, %s52
      %p66 = scmp.eq.s32.totalorder %s30, 1
      %p67 = por %p65, %p66
      %p69 = scmp.ne.s32.totalorder %s52, %s68
      %p70 = scmp.eq.s32.totalorder %s30, 0
      %p71 = por %p69, %p70
      %s73 = sadd.s32 %s72, 1
      %p76 = scmp.eq.s32.totalorder %s24, 1
      %p77 = scmp.ne.s32.totalorder %s72, %s74
      %p78 = scmp.eq.s32.totalorder %s24, 0
      %p79 = por %p77, %p78
      %p80 = scmp.ne.s32.totalorder %s72, %s74
      %p81 = scmp.eq.s32.totalorder %s29, 1
      %p82 = por %p80, %p81
      %p83 = scmp.ne.s32.totalorder %s74, %s75
      %p84 = scmp.eq.s32.totalorder %s29, 0
      %p85 = por %p83, %p84
      %p86 = scmp.ne.s32.totalorder %s74, %s75
      %p87 = scmp.eq.s32.totalorder %s30, 1
      %p88 = por %p86, %p87
      %p90 = scmp.ne.s32.totalorder %s75, %s89
      %p91 = scmp.eq.s32.totalorder %s30, 0
      %p92 = por %p90, %p91
      %s94 = sadd.s32 %s93, 1
      %p97 = scmp.eq.s32.totalorder %s24, 1
      %p98 = scmp.ne.s32.totalorder %s93, %s95
      %p99 = scmp.eq.s32.totalorder %s24, 0
      %p100 = por %p98, %p99
      %p101 = scmp.ne.s32.totalorder %s93, %s95
      %p102 = scmp.eq.s32.totalorder %s29, 1
      %p103 = por %p101, %p102
      %p104 = scmp.ne.s32.totalorder %s95, %s96
      %p105 = scmp.eq.s32.totalorder %s29, 0
      %p106 = por %p104, %p105
      %p107 = scmp.ne.s32.totalorder %s95, %s96
      %p108 = scmp.eq.s32.totalorder %s30, 1
      %p109 = por %p107, %p108
      %p111 = scmp.ne.s32.totalorder %s96, %s110
      %p112 = scmp.eq.s32.totalorder %s30, 0
      %p113 = por %p111, %p112
      %s115 = sadd.s32 %s114, 1
      %p118 = scmp.eq.s32.totalorder %s24, 1
      %p119 = scmp.ne.s32.totalorder %s114, %s116
      %p120 = scmp.eq.s32.totalorder %s24, 0
      %p121 = por %p119, %p120
      %p122 = scmp.ne.s32.totalorder %s114, %s116
      %p123 = scmp.eq.s32.totalorder %s29, 1
      %p124 = por %p122, %p123
      %p125 = scmp.ne.s32.totalorder %s116, %s117
      %p126 = scmp.eq.s32.totalorder %s29, 0
      %p127 = por %p125, %p126
      %p128 = scmp.ne.s32.totalorder %s116, %s117
      %p129 = scmp.eq.s32.totalorder %s30, 1
      %p130 = por %p128, %p129
      %p132 = scmp.ne.s32.totalorder %s117, %s131
      %p133 = scmp.eq.s32.totalorder %s30, 0
      %p134 = por %p132, %p133
      %s135 = ssub.s32 %s31, %s43
      %s136 = ssub.s32 %s32, %s39
      %s137 = sor.u32 %s135, %s136
      %p138 = scmp.eq.s32.totalorder %s137, 0
      %s140 = sadd.s32 %s139, 1
      %s141 = scalar_select %p138, %s139, %s140
      %p144 = pneg %p138
      %p145 = scmp.eq.s32.totalorder %s24, 1
      %p146 = por %p144, %p145
      %p147 = scmp.ne.s32.totalorder %s139, %s142
      %p148 = scmp.eq.s32.totalorder %s24, 0
      %p149 = por %p147, %p148
      %p150 = scmp.ne.s32.totalorder %s139, %s142
      %p151 = scmp.eq.s32.totalorder %s29, 1
      %p152 = por %p150, %p151
      %p153 = scmp.ne.s32.totalorder %s142, %s143
      %p154 = scmp.eq.s32.totalorder %s29, 0
      %p155 = por %p153, %p154
      %p156 = scmp.ne.s32.totalorder %s142, %s143
      %p157 = scmp.eq.s32.totalorder %s30, 1
      %p158 = por %p156, %p157
      %p160 = scmp.ne.s32.totalorder %s143, %s159
      %p161 = scmp.eq.s32.totalorder %s30, 0
      %p162 = por %p160, %p161
      %s163 = ssub.s32 %s31, %s43
      %s164 = ssub.s32 %s32, %s39
      %s165 = sor.u32 %s163, %s164
      %p166 = scmp.eq.s32.totalorder %s165, 0
      %s168 = sadd.s32 %s167, 1
      %s169 = scalar_select %p166, %s167, %s168
      %p172 = pneg %p166
      %p173 = scmp.eq.s32.totalorder %s24, 1
      %p174 = por %p172, %p173
      %p175 = scmp.ne.s32.totalorder %s167, %s170
      %p176 = scmp.eq.s32.totalorder %s24, 0
      %p177 = por %p175, %p176
      %p178 = scmp.ne.s32.totalorder %s167, %s170
      %p179 = scmp.eq.s32.totalorder %s29, 1
      %p180 = por %p178, %p179
      %p181 = scmp.ne.s32.totalorder %s170, %s171
      %p182 = scmp.eq.s32.totalorder %s29, 0
      %p183 = por %p181, %p182
      %p184 = scmp.ne.s32.totalorder %s170, %s171
      %p185 = scmp.eq.s32.totalorder %s30, 1
      %p186 = por %p184, %p185
      %p188 = scmp.ne.s32.totalorder %s171, %s187
      %p189 = scmp.eq.s32.totalorder %s30, 0
      %p190 = por %p188, %p189
      %s191 = ssub.s32 %s31, %s43
      %s192 = ssub.s32 %s32, %s39
      %s193 = sor.u32 %s191, %s192
      %p194 = scmp.eq.s32.totalorder %s193, 0
      %s196 = sadd.s32 %s195, 1
      %s197 = scalar_select %p194, %s195, %s196
      %p200 = pneg %p194
      %p201 = scmp.eq.s32.totalorder %s24, 1
      %p202 = por %p200, %p201
      %p203 = scmp.ne.s32.totalorder %s195, %s198
      %p204 = scmp.eq.s32.totalorder %s24, 0
      %p205 = por %p203, %p204
      %p206 = scmp.ne.s32.totalorder %s195, %s198
      %p207 = scmp.eq.s32.totalorder %s29, 1
      %p208 = por %p206, %p207
      %p209 = scmp.ne.s32.totalorder %s198, %s199
      %p210 = scmp.eq.s32.totalorder %s29, 0
      %p211 = por %p209, %p210
      %p212 = scmp.ne.s32.totalorder %s198, %s199
      %p213 = scmp.eq.s32.totalorder %s30, 1
      %p214 = por %p212, %p213
      %p216 = scmp.ne.s32.totalorder %s199, %s215
      %p217 = scmp.eq.s32.totalorder %s30, 0
      %p218 = por %p216, %p217
      %p219 = scmp.le.s32.totalorder 1, %s24
      %p220 = scmp.lt.s32.totalorder %s24, 3
      %p221 = pnand %p219, %p220
      %p222 = pneg %p221
      // Predicated region
      $region9: #{tpu_custom_call.1} parent=5 // pred_check
        _
      $region10: #{tpu_custom_call.1} parent=5 // pred_check_branch
        %224 = sbr.rel (%p221) target = $region12
      $region11: #{tpu_custom_call.1} parent=5 // pred_region
        %s225 = ssub.s32 %s24, 1
        // Predicated region
        $region13: #{tpu_custom_call.1} parent=11 // pred_check
          %p226 = pneg %p85
        $region14: #{tpu_custom_call.1} parent=11 // pred_check_branch
          %228 = sbr.rel (%p226) target = $region16
        $region15: #{tpu_custom_call.1} parent=11 // pred_region
          %s230 = ssub.s32 256, 256
          %231 = vsyncadd [#allocation6], %s230
          %s232 = sshll.u32 [#allocation5], 4
          %s233 = int_to_ptr.vmem [resolvable:$true] %s232
          %238 = dma.hbm_to_vmem [thread:$0]  %s1, 256, %s233, [#allocation6], 64, 64, 4
        $region16: #{tpu_custom_call.1} parent=11 // pred_fallthru
          _
        // Predicated region
        $region17: #{tpu_custom_call.1} parent=11 // pred_check
          %p239 = pneg %p106
        $region18: #{tpu_custom_call.1} parent=11 // pred_check_branch
          %241 = sbr.rel (%p239) target = $region20
        $region19: #{tpu_custom_call.1} parent=11 // pred_region
          %s243 = ssub.s32 256, 256
          %244 = vsyncadd [#allocation6], %s243
          %s245 = sshll.u32 [#allocation7], 4
          %s246 = int_to_ptr.vmem [resolvable:$true] %s245
          %251 = dma.hbm_to_vmem [thread:$0]  %s2, 256, %s246, [#allocation6], 64, 64, 4
        $region20: #{tpu_custom_call.1} parent=11 // pred_fallthru
          _
        // Predicated region
        $region21: #{tpu_custom_call.1} parent=11 // pred_check
          %p252 = pneg %p127
        $region22: #{tpu_custom_call.1} parent=11 // pred_check_branch
          %254 = sbr.rel (%p252) target = $region24
        $region23: #{tpu_custom_call.1} parent=11 // pred_region
          %s256 = ssub.s32 256, 256
          %257 = vsyncadd [#allocation9], %s256
          %s258 = sshll.u32 [#allocation8], 4
          %s259 = int_to_ptr.vmem [resolvable:$true] %s258
          %264 = dma.hbm_to_vmem [thread:$0]  %s3, 256, %s259, [#allocation9], 64, 64, 4
        $region24: #{tpu_custom_call.1} parent=11 // pred_fallthru
          _
      $region12: #{tpu_custom_call.1} parent=5 // pred_fallthru
        _
      %p265 = scmp.lt.s32.totalorder %s24, 2
      // Predicated region
      $region25: #{tpu_custom_call.1} parent=5 // pred_check
        %p266 = pneg %p265
      $region26: #{tpu_custom_call.1} parent=5 // pred_check_branch
        %268 = sbr.rel (%p266) target = $region28
      $region27: #{tpu_custom_call.1} parent=5 // pred_region
        // Predicated region
        $region29: #{tpu_custom_call.1} parent=27 // pred_check
          %p269 = pneg %p58
        $region30: #{tpu_custom_call.1} parent=27 // pred_check_branch
          %271 = sbr.rel (%p269) target = $region32
        $region31: #{tpu_custom_call.1} parent=27 // pred_region
          %s272 = sand.u32 %s48, 1
          %s273 = scalar_lea.sflag [#allocation3], %s272
          %s274 = sand.u32 %s48, 1
          %s275 = smul.addr %s274, 8
          %s276 = scalar_lea.vmem [#allocation2], %s275
          %s278 = ssub.s32 128, 128
          %279 = vsyncadd %s273, %s278
          %s280 = sadd.s32 %s32, %s31
          %s281 = smul.addr %s280, 128
          %s282 = scalar_lea.hbm %s0, %s281
          %s284 = sshll.u32 %s276, 4
          %s285 = int_to_ptr.vmem [resolvable:$true] %s284
          %287 = dma.hbm_to_vmem [thread:$0]  %s282, 128, %s285, %s273
        $region32: #{tpu_custom_call.1} parent=27 // pred_fallthru
          _
      $region28: #{tpu_custom_call.1} parent=5 // pred_fallthru
        _
      %p288 = scmp.le.s32.totalorder 1, %s24
      %p289 = scmp.lt.s32.totalorder %s24, 3
      %p290 = pnand %p288, %p289
      %p291 = pneg %p290
      // Predicated region
      $region33: #{tpu_custom_call.1} parent=5 // pred_check
        _
      $region34: #{tpu_custom_call.1} parent=5 // pred_check_branch
        %293 = sbr.rel (%p290) target = $region36
      $region35: #{tpu_custom_call.1} parent=5 // pred_region
        %s294 = ssub.s32 %s24, 1
        %s295 = sand.u32 %s51, 1
        %s296 = scalar_lea.sflag [#allocation3], %s295
        %s297 = sand.u32 %s51, 1
        %s298 = smul.addr %s297, 8
        %s299 = scalar_lea.vmem [#allocation2], %s298
        // Predicated region
        $region37: #{tpu_custom_call.1} parent=35 // pred_check
          %p300 = pneg %p64
        $region38: #{tpu_custom_call.1} parent=35 // pred_check_branch
          %302 = sbr.rel (%p300) target = $region40
        $region39: #{tpu_custom_call.1} parent=35 // pred_region
          %303 = dma.done %s296, 128
        $region40: #{tpu_custom_call.1} parent=35 // pred_fallthru
          _
        // Predicated region
        $region41: #{tpu_custom_call.1} parent=35 // pred_check
          %p304 = pneg %p85
        $region42: #{tpu_custom_call.1} parent=35 // pred_check_branch
          %306 = sbr.rel (%p304) target = $region44
        $region43: #{tpu_custom_call.1} parent=35 // pred_region
          %307 = dma.done [#allocation6], 256
        $region44: #{tpu_custom_call.1} parent=35 // pred_fallthru
          _
        // Predicated region
        $region45: #{tpu_custom_call.1} parent=35 // pred_check
          %p308 = pneg %p106
        $region46: #{tpu_custom_call.1} parent=35 // pred_check_branch
          %310 = sbr.rel (%p308) target = $region48
        $region47: #{tpu_custom_call.1} parent=35 // pred_region
          %311 = dma.done [#allocation6], 256
        $region48: #{tpu_custom_call.1} parent=35 // pred_fallthru
          _
        // Predicated region
        $region49: #{tpu_custom_call.1} parent=35 // pred_check
          %p312 = pneg %p127
        $region50: #{tpu_custom_call.1} parent=35 // pred_check_branch
          %314 = sbr.rel (%p312) target = $region52
        $region51: #{tpu_custom_call.1} parent=35 // pred_region
          %315 = dma.done [#allocation9], 256
        $region52: #{tpu_custom_call.1} parent=35 // pred_fallthru
          _
        %s316 = sand.u32 %s51, 1
        %s317 = scalar_lea.sflag [#allocation3], %s316
        %s318 = sand.u32 %s51, 1
        %s319 = smul.addr %s318, 8
        %s320 = scalar_lea.vmem [#allocation2], %s319
        %p321 = pneg %p64
        %p322 = pneg %p61
        %p323 = pneg %p85
        %p324 = pneg %p82
        %p325 = pneg %p106
        %p326 = pneg %p103
        %p327 = pneg %p127
        %p328 = pneg %p124
        %p329 = pneg %p155
        %p330 = pneg %p152
        %s331 = sand.u32 %s142, 1
        %s332 = scalar_lea.sflag [#allocation4], %s331
        %s333 = sand.u32 %s142, 1
        %s334 = smul.addr %s333, 4
        %s335 = scalar_lea.vmem [#allocation10], %s334
        %p336 = pneg %p183
        %p337 = pneg %p180
        %s338 = sand.u32 %s29, 1
        %s339 = scalar_lea.sflag [#allocation12], %s338
        %s340 = sand.u32 %s170, 1
        %s341 = smul.addr %s340, 4
        %s342 = scalar_lea.vmem [#allocation11], %s341
        %p343 = pneg %p211
        %p344 = pneg %p208
        %s345 = sand.u32 %s29, 1
        %s346 = scalar_lea.sflag [#allocation12], %s345
        %s347 = sand.u32 %s198, 1
        %s348 = smul.addr %s347, 4
        %s349 = scalar_lea.vmem [#allocation13], %s348
        %v351 = vld [vmem:[%s299] sm:$0xff]
        %v352 = vpack.c.bf16 %v351, %v351
        %v353 = vld [vmem:[#allocation5] sm:$0xf]
        %v354 = vld [vmem:[#allocation5 + $0x4] sm:$0xf]
        %v355 = vld [vmem:[#allocation5 + $0x8] sm:$0xf]
        %v356 = vld [vmem:[#allocation5 + $0xc] sm:$0xf]
        %v361 = vunpack.c.l.b16 %v353
        %v362 = vunpack.c.l.b16 %v354
        %v363 = vunpack.c.l.b16 %v355
        %v364 = vunpack.c.l.b16 %v356
        %v365 = vpack.c.b16 %v362, %v361
        %v366 = vpack.c.b16 %v364, %v363
        %vm369 = vcmask 261120
        %v371 = vsel %vm369, %v352, 0
        %373 = vmatprep.subr.bf16.mxu0 0
        %374 = vmatpush1.bf16.msra.mxu0 %v365
        %375 = vmatprep.subr.bf16.mxu0 0
        %376 = vmatpush1.bf16.msra.mxu0 %v366
        %377 = vmatprep.subr.bf16.mxu0 0
        %378 = vmatpush1.bf16.msra.mxu0 0
        %379 = vmatprep.subr.bf16.mxu0 0
        %380 = vmatpush1.bf16.msra.mxu0 0
        %381 = vmatprep.subr.bf16.mxu0 0
        %382 = vmatpush1.bf16.msra.mxu0 0
        %383 = vmatprep.subr.bf16.mxu0 0
        %384 = vmatpush1.bf16.msra.mxu0 0
        %385 = vmatprep.subr.bf16.mxu0 0
        %386 = vmatpush1.bf16.msra.mxu0 0
        %387 = vmatprep.subr.bf16.mxu0 0
        %388 = vmatpush1.bf16.msra.mxu0 0
        %389 = vmatprep.subr.bf16.mxu0 0
        %390 = vmatpush1.bf16.msra.mxu0 0
        %391 = vmatprep.subr.bf16.mxu0 0
        %392 = vmatpush1.bf16.msra.mxu0 0
        %393 = vmatprep.subr.bf16.mxu0 0
        %394 = vmatpush1.bf16.msra.mxu0 0
        %395 = vmatprep.subr.bf16.mxu0 0
        %396 = vmatpush1.bf16.msra.mxu0 0
        %397 = vmatprep.subr.bf16.mxu0 0
        %398 = vmatpush1.bf16.msra.mxu0 0
        %399 = vmatprep.subr.bf16.mxu0 0
        %400 = vmatpush1.bf16.msra.mxu0 0
        %401 = vmatprep.subr.bf16.mxu0 0
        %402 = vmatpush1.bf16.msra.mxu0 0
        %403 = vmatprep.subr.bf16.mxu0 0
        %404 = vmatpush1.bf16.msra.mxu0 0
        %405 = vmatprep.mubr.bf16.mxu0 0
        %406 = vmatmul.mubr.bf16.gmra.mrb[0].mxu0 %v371
        %v407 = vpop.f32.mrb[0].mxu0
        %v408 = vadd.f32 0.0, %v407
        %v409 = vpop.f32.mrb[0].mxu0
        %v410 = vpop.f32.mrb[0].mxu0
        %v411 = vpop.f32.mrb[0].mxu0
        %412 = vdwg.mxu0
        %v413 = vpack.c.bf16 %v408, %v408
        %vm414 = vcmask 519168
        %415 = vst.msk [vmem:[%s335] sm:$0xf] %vm414, %v413
        %v416 = vld [vmem:[#allocation7] sm:$0xf]
        %v417 = vld [vmem:[#allocation7 + $0x4] sm:$0xf]
        %v418 = vld [vmem:[#allocation7 + $0x8] sm:$0xf]
        %v419 = vld [vmem:[#allocation7 + $0xc] sm:$0xf]
        %v424 = vunpack.c.l.b16 %v416
        %v425 = vunpack.c.l.b16 %v417
        %v426 = vunpack.c.l.b16 %v418
        %v427 = vunpack.c.l.b16 %v419
        %v428 = vpack.c.b16 %v425, %v424
        %v429 = vpack.c.b16 %v427, %v426
        %432 = vmatprep.subr.bf16.mxu0 0
        %433 = vmatpush1.bf16.msra.mxu0 %v428
        %434 = vmatprep.subr.bf16.mxu0 0
        %435 = vmatpush1.bf16.msra.mxu0 %v429
        %436 = vmatprep.subr.bf16.mxu0 0
        %437 = vmatpush1.bf16.msra.mxu0 0
        %438 = vmatprep.subr.bf16.mxu0 0
        %439 = vmatpush1.bf16.msra.mxu0 0
        %440 = vmatprep.subr.bf16.mxu0 0
        %441 = vmatpush1.bf16.msra.mxu0 0
        %442 = vmatprep.subr.bf16.mxu0 0
        %443 = vmatpush1.bf16.msra.mxu0 0
        %444 = vmatprep.subr.bf16.mxu0 0
        %445 = vmatpush1.bf16.msra.mxu0 0
        %446 = vmatprep.subr.bf16.mxu0 0
        %447 = vmatpush1.bf16.msra.mxu0 0
        %448 = vmatprep.subr.bf16.mxu0 0
        %449 = vmatpush1.bf16.msra.mxu0 0
        %450 = vmatprep.subr.bf16.mxu0 0
        %451 = vmatpush1.bf16.msra.mxu0 0
        %452 = vmatprep.subr.bf16.mxu0 0
        %453 = vmatpush1.bf16.msra.mxu0 0
        %454 = vmatprep.subr.bf16.mxu0 0
        %455 = vmatpush1.bf16.msra.mxu0 0
        %456 = vmatprep.subr.bf16.mxu0 0
        %457 = vmatpush1.bf16.msra.mxu0 0
        %458 = vmatprep.subr.bf16.mxu0 0
        %459 = vmatpush1.bf16.msra.mxu0 0
        %460 = vmatprep.subr.bf16.mxu0 0
        %461 = vmatpush1.bf16.msra.mxu0 0
        %462 = vmatprep.subr.bf16.mxu0 0
        %463 = vmatpush1.bf16.msra.mxu0 0
        %464 = vmatprep.mubr.bf16.mxu0 0
        %465 = vmatmul.mubr.bf16.gmra.mrb[0].mxu0 %v371
        %v466 = vpop.f32.mrb[0].mxu0
        %v467 = vadd.f32 0.0, %v466
        %v468 = vpop.f32.mrb[0].mxu0
        %v469 = vpop.f32.mrb[0].mxu0
        %v470 = vpop.f32.mrb[0].mxu0
        %471 = vdwg.mxu0
        %v472 = vpack.c.bf16 %v467, %v467
        %473 = vst.msk [vmem:[%s342] sm:$0xf] %vm414, %v472
        %v474 = vld [vmem:[#allocation8] sm:$0xf]
        %v475 = vld [vmem:[#allocation8 + $0x4] sm:$0xf]
        %v476 = vld [vmem:[#allocation8 + $0x8] sm:$0xf]
        %v477 = vld [vmem:[#allocation8 + $0xc] sm:$0xf]
        %v482 = vunpack.c.l.b16 %v474
        %v483 = vunpack.c.l.b16 %v475
        %v484 = vunpack.c.l.b16 %v476
        %v485 = vunpack.c.l.b16 %v477
        %v486 = vpack.c.b16 %v483, %v482
        %v487 = vpack.c.b16 %v485, %v484
        %490 = vmatprep.subr.bf16.mxu0 0
        %491 = vmatpush1.bf16.msra.mxu0 %v486
        %492 = vmatprep.subr.bf16.mxu0 0
        %493 = vmatpush1.bf16.msra.mxu0 %v487
        %494 = vmatprep.subr.bf16.mxu0 0
        %495 = vmatpush1.bf16.msra.mxu0 0
        %496 = vmatprep.subr.bf16.mxu0 0
        %497 = vmatpush1.bf16.msra.mxu0 0
        %498 = vmatprep.subr.bf16.mxu0 0
        %499 = vmatpush1.bf16.msra.mxu0 0
        %500 = vmatprep.subr.bf16.mxu0 0
        %501 = vmatpush1.bf16.msra.mxu0 0
        %502 = vmatprep.subr.bf16.mxu0 0
        %503 = vmatpush1.bf16.msra.mxu0 0
        %504 = vmatprep.subr.bf16.mxu0 0
        %505 = vmatpush1.bf16.msra.mxu0 0
        %506 = vmatprep.subr.bf16.mxu0 0
        %507 = vmatpush1.bf16.msra.mxu0 0
        %508 = vmatprep.subr.bf16.mxu0 0
        %509 = vmatpush1.bf16.msra.mxu0 0
        %510 = vmatprep.subr.bf16.mxu0 0
        %511 = vmatpush1.bf16.msra.mxu0 0
        %512 = vmatprep.subr.bf16.mxu0 0
        %513 = vmatpush1.bf16.msra.mxu0 0
        %514 = vmatprep.subr.bf16.mxu0 0
        %515 = vmatpush1.bf16.msra.mxu0 0
        %516 = vmatprep.subr.bf16.mxu0 0
        %517 = vmatpush1.bf16.msra.mxu0 0
        %518 = vmatprep.subr.bf16.mxu0 0
        %519 = vmatpush1.bf16.msra.mxu0 0
        %520 = vmatprep.subr.bf16.mxu0 0
        %521 = vmatpush1.bf16.msra.mxu0 0
        %522 = vmatprep.mubr.bf16.mxu0 0
        %523 = vmatmul.mubr.bf16.gmra.mrb[0].mxu0 %v371
        %v524 = vpop.f32.mrb[0].mxu0
        %v525 = vadd.f32 0.0, %v524
        %v526 = vpop.f32.mrb[0].mxu0
        %v527 = vpop.f32.mrb[0].mxu0
        %v528 = vpop.f32.mrb[0].mxu0
        %529 = vdwg.mxu0
        %v530 = vpack.c.bf16 %v525, %v525
        %531 = vst.msk [vmem:[%s349] sm:$0xf] %vm414, %v530
        %s532 = sand.u32 %s142, 1
        %s533 = scalar_lea.sflag [#allocation4], %s532
        %s534 = sand.u32 %s142, 1
        %s535 = smul.addr %s534, 4
        %s536 = scalar_lea.vmem [#allocation10], %s535
        %s537 = sand.u32 %s29, 1
        %s538 = scalar_lea.sflag [#allocation12], %s537
        %s539 = sand.u32 %s170, 1
        %s540 = smul.addr %s539, 4
        %s541 = scalar_lea.vmem [#allocation11], %s540
        %s542 = sand.u32 %s29, 1
        %s543 = scalar_lea.sflag [#allocation12], %s542
        %s544 = sand.u32 %s198, 1
        %s545 = smul.addr %s544, 4
        %s546 = scalar_lea.vmem [#allocation13], %s545
        // Predicated region
        $region53: #{tpu_custom_call.1} parent=35 // pred_check
          %p547 = pneg %p152
        $region54: #{tpu_custom_call.1} parent=35 // pred_check_branch
          %549 = sbr.rel (%p547) target = $region56
        $region55: #{tpu_custom_call.1} parent=35 // pred_region
          %s551 = ssub.s32 64, 64
          %552 = vsyncadd %s533, %s551
          %s553 = sadd.s32 %s34, %s33
          %s554 = smul.addr %s553, 64
          %s555 = scalar_lea.hbm %s4, %s554
          %s557 = sshll.u32 %s536, 4
          %s558 = int_to_ptr.vmem [resolvable:$true] %s557
          %560 = dma.vmem_to_hbm [thread:$0]  %s558, 64, %s555, %s533
        $region56: #{tpu_custom_call.1} parent=35 // pred_fallthru
          _
        // Predicated region
        $region57: #{tpu_custom_call.1} parent=35 // pred_check
          %p561 = pneg %p180
        $region58: #{tpu_custom_call.1} parent=35 // pred_check_branch
          %563 = sbr.rel (%p561) target = $region60
        $region59: #{tpu_custom_call.1} parent=35 // pred_region
          %s565 = ssub.s32 64, 64
          %566 = vsyncadd %s538, %s565
          %s567 = sadd.s32 %s34, %s33
          %s568 = smul.addr %s567, 64
          %s569 = scalar_lea.hbm %s5, %s568
          %s571 = sshll.u32 %s541, 4
          %s572 = int_to_ptr.vmem [resolvable:$true] %s571
          %574 = dma.vmem_to_hbm [thread:$0]  %s572, 64, %s569, %s538
        $region60: #{tpu_custom_call.1} parent=35 // pred_fallthru
          _
        // Predicated region
        $region61: #{tpu_custom_call.1} parent=35 // pred_check
          %p575 = pneg %p208
        $region62: #{tpu_custom_call.1} parent=35 // pred_check_branch
          %577 = sbr.rel (%p575) target = $region64
        $region63: #{tpu_custom_call.1} parent=35 // pred_region
          %s579 = ssub.s32 64, 64
          %580 = vsyncadd %s543, %s579
          %s581 = sadd.s32 %s34, %s33
          %s582 = smul.addr %s581, 64
          %s583 = scalar_lea.hbm %s6, %s582
          %s585 = sshll.u32 %s546, 4
          %s586 = int_to_ptr.vmem [resolvable:$true] %s585
          %588 = dma.vmem_to_hbm [thread:$0]  %s586, 64, %s583, %s543
        $region64: #{tpu_custom_call.1} parent=35 // pred_fallthru
          _
      $region36: #{tpu_custom_call.1} parent=5 // pred_fallthru
        _
      %p589 = scmp.le.s32.totalorder 2, %s24
      // Predicated region
      $region65: #{tpu_custom_call.1} parent=5 // pred_check
        %p590 = pneg %p589
      $region66: #{tpu_custom_call.1} parent=5 // pred_check_branch
        %592 = sbr.rel (%p590) target = $region68
      $region67: #{tpu_custom_call.1} parent=5 // pred_region
        %s593 = ssub.s32 %s24, 2
        // Predicated region
        $region69: #{tpu_custom_call.1} parent=67 // pred_check
          %p594 = pneg %p158
        $region70: #{tpu_custom_call.1} parent=67 // pred_check_branch
          %596 = sbr.rel (%p594) target = $region72
        $region71: #{tpu_custom_call.1} parent=67 // pred_region
          %s597 = sand.u32 %s143, 1
          %s598 = scalar_lea.sflag [#allocation4], %s597
          %s599 = sand.u32 %s143, 1
          %s600 = smul.addr %s599, 4
          %s601 = scalar_lea.vmem [#allocation10], %s600
          %602 = dma.done %s598, 64
        $region72: #{tpu_custom_call.1} parent=67 // pred_fallthru
          _
        // Predicated region
        $region73: #{tpu_custom_call.1} parent=67 // pred_check
          %p603 = pneg %p186
        $region74: #{tpu_custom_call.1} parent=67 // pred_check_branch
          %605 = sbr.rel (%p603) target = $region76
        $region75: #{tpu_custom_call.1} parent=67 // pred_region
          %s606 = sand.u32 %s30, 1
          %s607 = scalar_lea.sflag [#allocation12], %s606
          %s608 = sand.u32 %s171, 1
          %s609 = smul.addr %s608, 4
          %s610 = scalar_lea.vmem [#allocation11], %s609
          %611 = dma.done %s607, 64
        $region76: #{tpu_custom_call.1} parent=67 // pred_fallthru
          _
        // Predicated region
        $region77: #{tpu_custom_call.1} parent=67 // pred_check
          %p612 = pneg %p214
        $region78: #{tpu_custom_call.1} parent=67 // pred_check_branch
          %614 = sbr.rel (%p612) target = $region80
        $region79: #{tpu_custom_call.1} parent=67 // pred_region
          %s615 = sand.u32 %s30, 1
          %s616 = scalar_lea.sflag [#allocation12], %s615
          %s617 = sand.u32 %s199, 1
          %s618 = smul.addr %s617, 4
          %s619 = scalar_lea.vmem [#allocation13], %s618
          %620 = dma.done %s616, 64
        $region80: #{tpu_custom_call.1} parent=67 // pred_fallthru
          _
      $region68: #{tpu_custom_call.1} parent=5 // pred_fallthru
        _
    $region6: #{tpu_custom_call.1} parent=1 // loop_footer
      %s28 = sadd.s32 1, %s24
    $region7: #{tpu_custom_call.1} parent=1 // loop_footer_branch
      %23 = sbr.rel target = $region3
    $region8: #{tpu_custom_call.1} parent=1 // loop_exit
      _
    %621 = vsyncpa [#allocation3], 1
    %s622 = scalar_lea.sflag [#allocation3], 1
    %623 = vsyncpa %s622, 1
    %624 = vsyncpa [#allocation6], 1
    %625 = vsyncpa [#allocation9], 1
    %626 = vsyncpa [#allocation4], 1
    %s627 = scalar_lea.sflag [#allocation4], 1
    %628 = vsyncpa %s627, 1
    %629 = vsyncpa [#allocation12], 1
    %s630 = scalar_lea.sflag [#allocation12], 1
    %631 = vsyncpa %s630, 1

</llo_original>
